<compile_context>
chip_gen: v5e
topology: v5e:2x2
jax: 0.10.0
libtpu: 0.0.40
codegen_flags: <defaults>
</compile_context>

<pallas_src>
import functools

import jax
import jax.numpy as jnp
from jax.experimental import pallas as pl
from jax.experimental.pallas import tpu as pltpu


def _embedding_kernel(x_ref, out_ref, asm_ref, *, freqs, c, out_c, logscale,
                      lane_chunk):
    """x_ref: (C, TB) block (batch on lanes).  out_ref: (TB, out_c) block.

    asm_ref: (round_up(out_c, 8), TB) f32 VMEM scratch used to assemble the
    channels-major result before the in-kernel relayout to (TB, out_c).
    """
    asm_rows = asm_ref.shape[0]
    tb = out_ref.shape[0]

    x = x_ref[...].astype(jnp.float32)               # (C, TB), compute in f32

    # ---- Assemble pieces (channels-major, lane-dense over batch). ----
    asm_ref[0:c, :] = x                                        # identity piece
    if asm_rows != out_c:
        # Deterministic pad rows (transposed then sliced off before the store).
        asm_ref[out_c:, :] = jnp.zeros((asm_rows - out_c, asm_ref.shape[1]),
                                       jnp.float32)

    if logscale:
        # Direct sin/cos per frequency; the argument 2^k * x is built by exact
        # doubling (multiplying by 2 is exact), so accuracy does not degrade
        # with N_freqs (no double-angle recurrence).
        fx = x
        for k in range(len(freqs)):
            asm_ref[(2 * k + 1) * c:(2 * k + 2) * c, :] = jnp.sin(fx)
            asm_ref[(2 * k + 2) * c:(2 * k + 3) * c, :] = jnp.cos(fx)
            if k + 1 < len(freqs):
                fx = fx * 2.0
    else:
        for k, f in enumerate(freqs):
            fx = f * x
            asm_ref[(2 * k + 1) * c:(2 * k + 2) * c, :] = jnp.sin(fx)
            asm_ref[(2 * k + 2) * c:(2 * k + 3) * c, :] = jnp.cos(fx)

    # ---- In-kernel relayout (out_c, TB) -> (TB, out_c), chunked over lanes.
    # XLU transposes on (asm_rows, lane_chunk) slabs (sublane dim multiple of
    # 8, lane dim 128-aligned); hidden under the output DMA, and it replaces a
    # full extra HBM pass that a wrapper-side transpose would cost.
    out_dtype = out_ref.dtype
    for j in range(tb // lane_chunk):
        lo = j * lane_chunk
        chunk = asm_ref[:, lo:lo + lane_chunk]        # (asm_rows, lane_chunk)
        out_ref[lo:lo + lane_chunk, :] = (
            chunk.T[:, :out_c].astype(out_dtype))     # (lane_chunk, out_c)


def nerf_embedding(x, n_freqs, logscale=True, block_b=None, out_dtype=None):
    """x: (B, in_channels) -> (B, in_channels * (2*n_freqs + 1))."""
    b, c = x.shape
    out_c = c * (2 * n_freqs + 1)
    out_dtype = x.dtype if out_dtype is None else jnp.dtype(out_dtype)

    if logscale:
        freqs = tuple(float(2.0 ** k) for k in range(n_freqs))
    else:
        lo, hi = 1.0, float(2.0 ** (n_freqs - 1))
        freqs = tuple(
            float(lo + (hi - lo) * i / max(n_freqs - 1, 1)) for i in range(n_freqs)
        )

    itemsize = jnp.dtype(x.dtype).itemsize
    out_itemsize = jnp.dtype(out_dtype).itemsize
    asm_rows = ((out_c + 7) // 8) * 8
    lane_pad_out = max(128, ((out_c + 127) // 128) * 128)   # VMEM lane padding

    # ---- Batch-tile size: lane-dense and large (per-step overhead ~0.35us,
    # want >= ~2 MiB of HBM traffic per step), bounded by a VMEM budget that
    # accounts for the lane-padded (TB, out_c) output blocks. ----
    per_lane_bytes = (2 * 8 * itemsize                    # in blocks (2 bufs)
                      + 2 * lane_pad_out * out_itemsize   # out blocks (2 bufs)
                      + 4 * asm_rows)                     # f32 assembly scratch
    if block_b is None:
        budget = 24 * 1024 * 1024
        block_b = (budget // per_lane_bytes) // 2048 * 2048
        block_b = max(128, min(block_b, 32768))
    if b >= 128:
        block_b = max(128, min(block_b // 128 * 128, b // 128 * 128))
    else:
        block_b = b                      # single full-extent block; tiny batch
    lane_chunk = 512 if block_b % 512 == 0 else (
        128 if block_b % 128 == 0 else block_b)

    n_blocks = pl.cdiv(b, block_b)

    # Channels-major view so the (large) batch axis sits on the 128-lane dim.
    # This small input transpose is ~1/(2N+2) of total traffic; no padded copy.
    x_t = x.T                                            # (C, B)

    vmem_limit = int(min(per_lane_bytes * block_b + 8 * 1024 * 1024,
                         56 * 1024 * 1024))

    kernel = functools.partial(
        _embedding_kernel, freqs=freqs, c=c, out_c=out_c, logscale=logscale,
        lane_chunk=lane_chunk,
    )

    cost = pl.CostEstimate(
        flops=int(6 * max(n_freqs, 1) * b * c),
        transcendentals=int(2 * n_freqs * b * c),
        bytes_accessed=int(itemsize * b * c + out_itemsize * b * out_c),
    )

    out = pl.pallas_call(
        kernel,
        out_shape=jax.ShapeDtypeStruct((b, out_c), out_dtype),
        grid=(n_blocks,),
        in_specs=[pl.BlockSpec((c, block_b), lambda i: (0, i))],
        out_specs=pl.BlockSpec((block_b, out_c), lambda i: (i, 0)),
        scratch_shapes=[pltpu.VMEM((asm_rows, block_b), jnp.float32)],
        compiler_params=pltpu.CompilerParams(
            dimension_semantics=("parallel",),   # splits grid across v7x's 2 TCs
            vmem_limit_bytes=vmem_limit,         # clears v5e's 16 MiB scoped default
        ),
        cost_estimate=cost,
    )(x_t)
    return out


def _reference(x, n_freqs, logscale=True):
    """Pure-JAX reference mirroring the PyTorch forward."""
    if logscale:
        freqs = 2.0 ** jnp.linspace(0.0, n_freqs - 1, n_freqs)
    else:
        freqs = jnp.linspace(1.0, 2.0 ** (n_freqs - 1), n_freqs)
    out = [x]
    for f in freqs:
        out.append(jnp.sin(f * x))
        out.append(jnp.cos(f * x))
    return jnp.concatenate(out, axis=-1)


if __name__ == "__main__":
    # Module has no learned parameters; only N_freqs / in_channels config.
    B, IN_CHANNELS, N_FREQS = 256, 3, 4   # out_channels = 3 * (2*4 + 1) = 27

    key = jax.random.PRNGKey(0)
    x = jax.random.normal(key, (B, IN_CHANNELS), dtype=jnp.float32)

    # logscale=True path.
    out = nerf_embedding(x, N_FREQS, logscale=True)
    out = jax.block_until_ready(out)
    ref = _reference(x, N_FREQS, logscale=True)
    assert out.shape == (B, IN_CHANNELS * (2 * N_FREQS + 1)), out.shape
    assert jnp.allclose(out, ref, atol=1e-5, rtol=1e-5), "logscale mismatch vs reference"

    # logscale=False path.
    out_lin = nerf_embedding(x, N_FREQS, logscale=False)
    out_lin = jax.block_until_ready(out_lin)
    ref_lin = _reference(x, N_FREQS, logscale=False)
    assert jnp.allclose(out_lin, ref_lin, atol=1e-5, rtol=1e-5), "linear mismatch vs reference"

    print("KERNEL_OK")
</pallas_src>

<mosaic_0001>
module attributes {stable_mosaic.version = 11 : i64} {
  func.func @_embedding_kernel(%arg0: i32, %arg1: memref<3x256xf32, #tpu.memory_space<vmem>>, %arg2: memref<256x27xf32, #tpu.memory_space<vmem>>, %arg3: memref<32x256xf32, #tpu.memory_space<vmem>>) attributes {dimension_semantics = [#tpu.dimension_semantics<parallel>], iteration_bounds = array<i64: 1>, scalar_prefetch = 0 : i64, scratch_operands = 1 : i64, tpu.core_type = #tpu.core_type<tc>, window_params = [{transform_indices = @transform_0, window_bounds = array<i64: 3, 256>}, {transform_indices = @transform_1, window_bounds = array<i64: 256, 27>}]} {
    %c0 = arith.constant 0 : index
    %c0_0 = arith.constant 0 : index
    %0 = vector.load %arg1[%c0, %c0_0] : memref<3x256xf32, #tpu.memory_space<vmem>>, vector<3x256xf32>
    %c0_1 = arith.constant 0 : index
    %c0_2 = arith.constant 0 : index
    %1 = vector.load %arg3[%c0_1, %c0_2] : memref<32x256xf32, #tpu.memory_space<vmem>>, vector<3x256xf32>
    tpu.vector_store %arg3[%c0_1, %c0_2], %0 {strides = array<i32>} : memref<32x256xf32, #tpu.memory_space<vmem>>, vector<3x256xf32>,
    %cst = arith.constant 0.000000e+00 : f32
    %2 = vector.broadcast %cst : f32 to vector<5x256xf32>
    %c27 = arith.constant 27 : index
    %c0_3 = arith.constant 0 : index
    %3 = vector.load %arg3[%c27, %c0_3] : memref<32x256xf32, #tpu.memory_space<vmem>>, vector<5x256xf32>
    tpu.vector_store %arg3[%c27, %c0_3], %2 {strides = array<i32>} : memref<32x256xf32, #tpu.memory_space<vmem>>, vector<5x256xf32>,
    %4 = math.sin %0 : vector<3x256xf32>
    %c3 = arith.constant 3 : index
    %c0_4 = arith.constant 0 : index
    %5 = vector.load %arg3[%c3, %c0_4] : memref<32x256xf32, #tpu.memory_space<vmem>>, vector<3x256xf32>
    tpu.vector_store %arg3[%c3, %c0_4], %4 {strides = array<i32>} : memref<32x256xf32, #tpu.memory_space<vmem>>, vector<3x256xf32>,
    %6 = math.cos %0 : vector<3x256xf32>
    %c6 = arith.constant 6 : index
    %c0_5 = arith.constant 0 : index
    %7 = vector.load %arg3[%c6, %c0_5] : memref<32x256xf32, #tpu.memory_space<vmem>>, vector<3x256xf32>
    tpu.vector_store %arg3[%c6, %c0_5], %6 {strides = array<i32>} : memref<32x256xf32, #tpu.memory_space<vmem>>, vector<3x256xf32>,
    %cst_6 = arith.constant 2.000000e+00 : f32
    %8 = vector.broadcast %cst_6 : f32 to vector<3x256xf32>
    %9 = arith.mulf %0, %8 : vector<3x256xf32>
    %10 = math.sin %9 : vector<3x256xf32>
    %c9 = arith.constant 9 : index
    %c0_7 = arith.constant 0 : index
    %11 = vector.load %arg3[%c9, %c0_7] : memref<32x256xf32, #tpu.memory_space<vmem>>, vector<3x256xf32>
    tpu.vector_store %arg3[%c9, %c0_7], %10 {strides = array<i32>} : memref<32x256xf32, #tpu.memory_space<vmem>>, vector<3x256xf32>,
    %12 = math.cos %9 : vector<3x256xf32>
    %c12 = arith.constant 12 : index
    %c0_8 = arith.constant 0 : index
    %13 = vector.load %arg3[%c12, %c0_8] : memref<32x256xf32, #tpu.memory_space<vmem>>, vector<3x256xf32>
    tpu.vector_store %arg3[%c12, %c0_8], %12 {strides = array<i32>} : memref<32x256xf32, #tpu.memory_space<vmem>>, vector<3x256xf32>,
    %cst_9 = arith.constant 2.000000e+00 : f32
    %14 = vector.broadcast %cst_9 : f32 to vector<3x256xf32>
    %15 = arith.mulf %9, %14 : vector<3x256xf32>
    %16 = math.sin %15 : vector<3x256xf32>
    %c15 = arith.constant 15 : index
    %c0_10 = arith.constant 0 : index
    %17 = vector.load %arg3[%c15, %c0_10] : memref<32x256xf32, #tpu.memory_space<vmem>>, vector<3x256xf32>
    tpu.vector_store %arg3[%c15, %c0_10], %16 {strides = array<i32>} : memref<32x256xf32, #tpu.memory_space<vmem>>, vector<3x256xf32>,
    %18 = math.cos %15 : vector<3x256xf32>
    %c18 = arith.constant 18 : index
    %c0_11 = arith.constant 0 : index
    %19 = vector.load %arg3[%c18, %c0_11] : memref<32x256xf32, #tpu.memory_space<vmem>>, vector<3x256xf32>
    tpu.vector_store %arg3[%c18, %c0_11], %18 {strides = array<i32>} : memref<32x256xf32, #tpu.memory_space<vmem>>, vector<3x256xf32>,
    %cst_12 = arith.constant 2.000000e+00 : f32
    %20 = vector.broadcast %cst_12 : f32 to vector<3x256xf32>
    %21 = arith.mulf %15, %20 : vector<3x256xf32>
    %22 = math.sin %21 : vector<3x256xf32>
    %c21 = arith.constant 21 : index
    %c0_13 = arith.constant 0 : index
    %23 = vector.load %arg3[%c21, %c0_13] : memref<32x256xf32, #tpu.memory_space<vmem>>, vector<3x256xf32>
    tpu.vector_store %arg3[%c21, %c0_13], %22 {strides = array<i32>} : memref<32x256xf32, #tpu.memory_space<vmem>>, vector<3x256xf32>,
    %24 = math.cos %21 : vector<3x256xf32>
    %c24 = arith.constant 24 : index
    %c0_14 = arith.constant 0 : index
    %25 = vector.load %arg3[%c24, %c0_14] : memref<32x256xf32, #tpu.memory_space<vmem>>, vector<3x256xf32>
    tpu.vector_store %arg3[%c24, %c0_14], %24 {strides = array<i32>} : memref<32x256xf32, #tpu.memory_space<vmem>>, vector<3x256xf32>,
    %c0_15 = arith.constant 0 : index
    %c0_16 = arith.constant 0 : index
    %26 = vector.load %arg3[%c0_15, %c0_16] : memref<32x256xf32, #tpu.memory_space<vmem>>, vector<32x128xf32>
    %27 = tpu.transpose %26, [1, 0] : vector<32x128xf32> -> vector<128x32xf32>
    %28 = vector.extract_strided_slice %27 {offsets = [0, 0], sizes = [128, 27], strides = [1, 1]} : vector<128x32xf32> to vector<128x27xf32>
    %c0_17 = arith.constant 0 : index
    %c0_18 = arith.constant 0 : index
    %29 = vector.load %arg2[%c0_17, %c0_18] : memref<256x27xf32, #tpu.memory_space<vmem>>, vector<128x27xf32>
    tpu.vector_store %arg2[%c0_17, %c0_18], %28 {strides = array<i32>} : memref<256x27xf32, #tpu.memory_space<vmem>>, vector<128x27xf32>,
    %c0_19 = arith.constant 0 : index
    %c128 = arith.constant 128 : index
    %30 = vector.load %arg3[%c0_19, %c128] : memref<32x256xf32, #tpu.memory_space<vmem>>, vector<32x128xf32>
    %31 = tpu.transpose %30, [1, 0] : vector<32x128xf32> -> vector<128x32xf32>
    %32 = vector.extract_strided_slice %31 {offsets = [0, 0], sizes = [128, 27], strides = [1, 1]} : vector<128x32xf32> to vector<128x27xf32>
    %c128_20 = arith.constant 128 : index
    %c0_21 = arith.constant 0 : index
    %33 = vector.load %arg2[%c128_20, %c0_21] : memref<256x27xf32, #tpu.memory_space<vmem>>, vector<128x27xf32>
    tpu.vector_store %arg2[%c128_20, %c0_21], %32 {strides = array<i32>} : memref<256x27xf32, #tpu.memory_space<vmem>>, vector<128x27xf32>,
    return
  }
  func.func @transform_0(%arg0: i32) -> (i32, i32) {
    %c0_i32 = arith.constant 0 : i32
    %c0_i32_0 = arith.constant 0 : i32
    return %c0_i32, %arg0 : i32, i32
  }
  func.func @transform_1(%arg0: i32) -> (i32, i32) {
    %c0_i32 = arith.constant 0 : i32
    %c0_i32_0 = arith.constant 0 : i32
    return %arg0, %c0_i32 : i32, i32
  }
}

</mosaic_0001>

<llo_original>
// kernel: tpu_custom_call.1
$region0: #{tpu_custom_call.1}
  #allocation0 [shape = 'u32[]', space=smem, size = 0x4, offset = 0x4, fixed_abs, tag = 'smem constant byte address 0x4 - core index']
  #allocation1 [shape = 'u32[72,128]{1,0:T(1,128)}', space=vmem, size = 0x9000, scoped, tag = 'internal scratch']
  #allocation2 [shape = 'f32[32,256]{1,0:T(8,128)}', space=vmem, size = 0x8000, scoped, tag = 'scratch operand']
  %s0 = inlined_call_operand.hbm [shape: f32[3,256], index: 0, kind: input, shape index: {}]
  %s1 = inlined_call_operand.vmem [shape: f32[256,27], index: 1, kind: output, shape index: {}]
  %s2 = sld [smem:[#allocation0]]
  $region18: #{tpu_custom_call.1} parent=0
    _
  %s4 = ssub.s32 1, %s2
  %s5 = scalar_select 0, %s4, %s2
  $region1: #{tpu_custom_call.1} parent=0
    #allocation3 [shape = 'u8[4096]{0}', space=vmem, size = 0x1000, scoped, tag = 'input window, operand 0, single buffered']
    #allocation4 [shape = 's32[1]{0}', space=sflag, size = 0x4, scoped, tag = 'scoped memory for tpu_custom_call.1']
    %6 = vsyncpa [#allocation4], 0
    // Predicated region
    $region2: #{tpu_custom_call.1} parent=1 // pred_check
      _
    $region3: #{tpu_custom_call.1} parent=1 // pred_check_branch
      %8 = sbr.rel (0) target = $region5
    $region4: #{tpu_custom_call.1} parent=1 // pred_region
      %10 = vsyncadd [#allocation4], 0
      %s12 = sshll.u32 %s0, 4
      %s13 = int_to_ptr.hbm [resolvable:$true] %s12
      %s14 = sshll.u32 [#allocation3], 4
      %s15 = int_to_ptr.vmem [resolvable:$true] %s14
      %17 = dma.hbm_to_vmem [thread:$0]  %s13, 128, %s15, [#allocation4]
    $region5: #{tpu_custom_call.1} parent=1 // pred_fallthru
      _
    // Predicated region
    $region6: #{tpu_custom_call.1} parent=1 // pred_check
      _
    $region7: #{tpu_custom_call.1} parent=1 // pred_check_branch
      %19 = sbr.rel (0) target = $region9
    $region8: #{tpu_custom_call.1} parent=1 // pred_region
      %21 = dma.done [#allocation4], 128
    $region9: #{tpu_custom_call.1} parent=1 // pred_fallthru
      _
    %v22 = vld [vmem:[#allocation3] sm:$0x77]
    %24 = vst [vmem:[#allocation1] ss:$2 sm:$0xff] %v22
    %v25 = vld.sshfl [vmem:[#allocation1] sm:$0xff pattern:$0x75316420]
    %v26 = vld.sshfl [vmem:[#allocation1 + $0x8] sm:$0xff pattern:$0x75316420]
    %29 = vst [vmem:[#allocation2] sm:$0x7] %v25
    %30 = vst [vmem:[#allocation2 + $0x8] sm:$0x7] %v26
    %31 = vst [vmem:[#allocation2 + $0x30] sm:$0xf8] 0.0
    %32 = vst [vmem:[#allocation2 + $0x38] sm:$0xf8] 0.0
    %v33 = vand.u32 2147483647, %v22
    %vm34 = vcmp.le.f32.partialorder %v33, 0.7853982
    %vm35 = vcmp.lt.s32.totalorder %v22, 0
    %v36 = vand.u32 %v22, 2139095040
    %v37 = vshrl.u32 %v36, 23
    %v38 = vsub.s32 %v37, 127
    %v39 = vand.u32 2147483647, %v22
    %v40 = vand.u32 %v39, 8388607
    %v41 = vor.u32 %v40, 8388608
    %v42 = vsub.s32 0, %v41
    %v43 = vadd.s32 %v38, 1
    %vm44 = vcmp.gt.s32.totalorder %v43, 0
    %v45 = vsel %vm44, %v43, 0
    %v46 = vshrl.u32 %v45, 5
    %v47 = vand.u32 %v45, 31
    %v48 = vsub.s32 32, %v47
    %v49 = vshrl.u32 683565275, %v48
    %v50 = vshll.u32 683565275, %v47
    %v51 = vshrl.u32 2475754826, %v48
    %v52 = vor.u32 %v50, %v51
    %v53 = vshll.u32 2475754826, %v47
    %v54 = vshrl.u32 2131351028, %v48
    %v55 = vor.u32 %v53, %v54
    %v56 = vshll.u32 2131351028, %v47
    %v57 = vshrl.u32 2102212464, %v48
    %v58 = vor.u32 %v56, %v57
    %v59 = vshll.u32 2102212464, %v47
    %v60 = vshrl.u32 920167782, %v48
    %v61 = vor.u32 %v59, %v60
    %v62 = vshll.u32 920167782, %v47
    %v63 = vshrl.u32 1326507024, %v48
    %v64 = vor.u32 %v62, %v63
    %vm65 = vcmp.lt.s32.totalorder %v46, 1
    %vm66 = vcmp.lt.s32.totalorder %v46, 2
    %vm67 = vcmp.lt.s32.totalorder %v46, 3
    %vm68 = vcmp.lt.s32.totalorder %v46, 4
    %v69 = vsel %vm65, %v49, %v52
    %v70 = vsel %vm68, %v58, 2102212464
    %v71 = vsel %vm67, %v55, %v70
    %v72 = vsel %vm66, %v69, %v71
    %v73 = vsel %vm65, %v52, %v55
    %v74 = vsel %vm68, %v61, 920167782
    %v75 = vsel %vm67, %v58, %v74
    %v76 = vsel %vm66, %v73, %v75
    %v77 = vsel %vm65, %v55, %v58
    %v78 = vsel %vm68, %v64, 1326507024
    %v79 = vsel %vm67, %v61, %v78
    %v80 = vsel %vm66, %v77, %v79
    %v81 = vshll.u32 %v41, 8
    %v82 = vand.u32 %v81, 65535
    %v83 = vshrl.u32 %v81, 16
    %v84 = vand.u32 %v80, 65535
    %v85 = vshrl.u32 %v80, 16
    %v86 = vmul.u32 %v82, %v84
    %v87 = vmul.u32 %v82, %v85
    %v88 = vmul.u32 %v83, %v84
    %v89 = vmul.u32 %v83, %v85
    %v90 = vshll.u32 %v87, 16
    %v91 = vshrl.u32 %v87, 16
    %v92 = vshll.u32 %v88, 16
    %v93 = vshrl.u32 %v88, 16
    %vm94 = vc.u32 %v86, %v90
    %v95 = vsel %vm94, 1, 0
    %v96 = vadd.s32 %v86, %v90
    %v97 = vadd.s32 %v89, %v95
    %vm98 = vc.u32 %v96, %v92
    %v99 = vsel %vm98, 1, 0
    %v100 = vadd.s32 %v96, %v92
    %v101 = vadd.s32 %v97, %v99
    %v102 = vadd.s32 %v101, %v91
    %v103 = vadd.s32 %v102, %v93
    %v104 = vand.u32 %v81, 65535
    %v105 = vshrl.u32 %v81, 16
    %v106 = vand.u32 %v76, 65535
    %v107 = vshrl.u32 %v76, 16
    %v108 = vmul.u32 %v104, %v106
    %v109 = vmul.u32 %v104, %v107
    %v110 = vmul.u32 %v105, %v106
    %v111 = vmul.u32 %v105, %v107
    %v112 = vshll.u32 %v109, 16
    %v113 = vshrl.u32 %v109, 16
    %v114 = vshll.u32 %v110, 16
    %v115 = vshrl.u32 %v110, 16
    %vm116 = vc.u32 %v108, %v112
    %v117 = vsel %vm116, 1, 0
    %v118 = vadd.s32 %v108, %v112
    %v119 = vadd.s32 %v111, %v117
    %vm120 = vc.u32 %v118, %v114
    %v121 = vsel %vm120, 1, 0
    %v122 = vadd.s32 %v118, %v114
    %v123 = vadd.s32 %v119, %v121
    %v124 = vadd.s32 %v123, %v113
    %v125 = vadd.s32 %v124, %v115
    %v126 = vmul.u32 %v81, %v72
    %v127 = vadd.s32 %v103, %v122
    %vm128 = vc.u32 %v103, %v122
    %v129 = vadd.s32 %v125, 1
    %v130 = vsel %vm128, %v129, %v125
    %v131 = vadd.s32 %v126, %v130
    %v132 = vadd.s32 %v131, 536870912
    %v133 = vshrl.u32 %v132, 30
    %v134 = vshll.u32 %v133, 30
    %v135 = vsub.s32 %v131, %v134
    %vm136 = vcmp.lt.s32.totalorder %v135, 0
    %v137 = vsub.s32 0, %v135
    %v138 = vsel %vm136, %v137, %v135
    %v139 = vclz %v138
    %v140 = vsub.s32 %v139, 2
    %vm141 = vcmp.gt.s32.totalorder 0, %v140
    %v142 = vsel %vm141, 0, %v140
    %v143 = vsub.s32 32, %v142
    %v144 = vshll.u32 %v135, %v142
    %v145 = vshrl.u32 %v127, %v143
    %v146 = vor.u32 %v144, %v145
    %v147 = vsub.s32 4294967266, %v142
    %v148 = vadd.s32 %v147, 127
    %v149 = vshll.u32 %v148, 23
    %v150 = vor.u32 4788187, %v149
    %v151 = vand.u32 2147483647, %v150
    %v153 = vcvt.s32.f32 %v146
    %v154 = vmul.f32 %v153, %v151
    %v155 = vxor.u32 %v154, 2147483648
    %v156 = vsel %vm35, %v155, %v154
    %v157 = vsub.s32 4, %v133
    %v158 = vsel %vm35, %v157, %v133
    %v159 = vsel %vm34, %v22, %v156
    %v160 = vsel %vm34, 0, %v158
    %v161 = vmul.f32 %v159, %v159
    %v162 = vmul.f32 %v161, -0.001358992
    %v163 = vadd.f32 %v162, 0.041655596
    %v164 = vmul.f32 %v161, %v163
    %v165 = vadd.f32 %v164, -0.4999988
    %v166 = vmul.f32 %v161, %v165
    %v167 = vadd.f32 1.0, %v166
    %v168 = vmul.f32 %v159, %v159
    %v169 = vmul.f32 %v168, -0.00019511016
    %v170 = vadd.f32 %v169, 0.008332121
    %v171 = vmul.f32 %v168, %v170
    %v172 = vadd.f32 %v171, -0.16666654
    %v173 = vmul.f32 %v168, %v172
    %v174 = vadd.f32 %v173, 1.0
    %v175 = vmul.f32 %v174, %v159
    %vm176 = vweird.f32 %v22
    %v177 = vadd.s32 %v160, 3
    %v178 = vand.u32 %v177, 3
    %vm179 = vcmp.lt.s32.totalorder %v178, 2
    %vm180 = vcmp.eq.s32.totalorder %v178, 0
    %v181 = vxor.u32 %v175, 2147483648
    %v182 = vsel %vm180, %v167, %v181
    %vm183 = vcmp.eq.s32.totalorder %v178, 2
    %v184 = vxor.u32 %v167, 2147483648
    %v185 = vsel %vm183, %v184, %v175
    %v186 = vsel %vm179, %v182, %v185
    %v187 = vsel %vm176, nan, %v186
    %189 = vst [vmem:[#allocation1] ss:$2 sm:$0xff] %v187
    %v190 = vld.sshfl [vmem:[#allocation1] sm:$0xff pattern:$0x75316420]
    %v191 = vld.sshfl [vmem:[#allocation1 + $0x8] sm:$0xff pattern:$0x75316420]
    %v192 = vrot.slane %v190, 5
    %v193 = vrot.slane %v191, 5
    %196 = vst [vmem:[#allocation2] sm:$0x38] %v192
    %197 = vst [vmem:[#allocation2 + $0x8] sm:$0x38] %v193
    %v198 = vand.u32 2147483647, %v22
    %vm199 = vcmp.le.f32.partialorder %v198, 0.7853982
    %vm200 = vcmp.lt.s32.totalorder %v22, 0
    %v201 = vand.u32 %v22, 2139095040
    %v202 = vshrl.u32 %v201, 23
    %v203 = vsub.s32 %v202, 127
    %v204 = vand.u32 2147483647, %v22
    %v205 = vand.u32 %v204, 8388607
    %v206 = vor.u32 %v205, 8388608
    %v207 = vsub.s32 0, %v206
    %v208 = vadd.s32 %v203, 1
    %vm209 = vcmp.gt.s32.totalorder %v208, 0
    %v210 = vsel %vm209, %v208, 0
    %v211 = vshrl.u32 %v210, 5
    %v212 = vand.u32 %v210, 31
    %v213 = vsub.s32 32, %v212
    %v214 = vshrl.u32 683565275, %v213
    %v215 = vshll.u32 683565275, %v212
    %v216 = vshrl.u32 2475754826, %v213
    %v217 = vor.u32 %v215, %v216
    %v218 = vshll.u32 2475754826, %v212
    %v219 = vshrl.u32 2131351028, %v213
    %v220 = vor.u32 %v218, %v219
    %v221 = vshll.u32 2131351028, %v212
    %v222 = vshrl.u32 2102212464, %v213
    %v223 = vor.u32 %v221, %v222
    %v224 = vshll.u32 2102212464, %v212
    %v225 = vshrl.u32 920167782, %v213
    %v226 = vor.u32 %v224, %v225
    %v227 = vshll.u32 920167782, %v212
    %v228 = vshrl.u32 1326507024, %v213
    %v229 = vor.u32 %v227, %v228
    %vm230 = vcmp.lt.s32.totalorder %v211, 1
    %vm231 = vcmp.lt.s32.totalorder %v211, 2
    %vm232 = vcmp.lt.s32.totalorder %v211, 3
    %vm233 = vcmp.lt.s32.totalorder %v211, 4
    %v234 = vsel %vm230, %v214, %v217
    %v235 = vsel %vm233, %v223, 2102212464
    %v236 = vsel %vm232, %v220, %v235
    %v237 = vsel %vm231, %v234, %v236
    %v238 = vsel %vm230, %v217, %v220
    %v239 = vsel %vm233, %v226, 920167782
    %v240 = vsel %vm232, %v223, %v239
    %v241 = vsel %vm231, %v238, %v240
    %v242 = vsel %vm230, %v220, %v223
    %v243 = vsel %vm233, %v229, 1326507024
    %v244 = vsel %vm232, %v226, %v243
    %v245 = vsel %vm231, %v242, %v244
    %v246 = vshll.u32 %v206, 8
    %v247 = vand.u32 %v246, 65535
    %v248 = vshrl.u32 %v246, 16
    %v249 = vand.u32 %v245, 65535
    %v250 = vshrl.u32 %v245, 16
    %v251 = vmul.u32 %v247, %v249
    %v252 = vmul.u32 %v247, %v250
    %v253 = vmul.u32 %v248, %v249
    %v254 = vmul.u32 %v248, %v250
    %v255 = vshll.u32 %v252, 16
    %v256 = vshrl.u32 %v252, 16
    %v257 = vshll.u32 %v253, 16
    %v258 = vshrl.u32 %v253, 16
    %vm259 = vc.u32 %v251, %v255
    %v260 = vsel %vm259, 1, 0
    %v261 = vadd.s32 %v251, %v255
    %v262 = vadd.s32 %v254, %v260
    %vm263 = vc.u32 %v261, %v257
    %v264 = vsel %vm263, 1, 0
    %v265 = vadd.s32 %v261, %v257
    %v266 = vadd.s32 %v262, %v264
    %v267 = vadd.s32 %v266, %v256
    %v268 = vadd.s32 %v267, %v258
    %v269 = vand.u32 %v246, 65535
    %v270 = vshrl.u32 %v246, 16
    %v271 = vand.u32 %v241, 65535
    %v272 = vshrl.u32 %v241, 16
    %v273 = vmul.u32 %v269, %v271
    %v274 = vmul.u32 %v269, %v272
    %v275 = vmul.u32 %v270, %v271
    %v276 = vmul.u32 %v270, %v272
    %v277 = vshll.u32 %v274, 16
    %v278 = vshrl.u32 %v274, 16
    %v279 = vshll.u32 %v275, 16
    %v280 = vshrl.u32 %v275, 16
    %vm281 = vc.u32 %v273, %v277
    %v282 = vsel %vm281, 1, 0
    %v283 = vadd.s32 %v273, %v277
    %v284 = vadd.s32 %v276, %v282
    %vm285 = vc.u32 %v283, %v279
    %v286 = vsel %vm285, 1, 0
    %v287 = vadd.s32 %v283, %v279
    %v288 = vadd.s32 %v284, %v286
    %v289 = vadd.s32 %v288, %v278
    %v290 = vadd.s32 %v289, %v280
    %v291 = vmul.u32 %v246, %v237
    %v292 = vadd.s32 %v268, %v287
    %vm293 = vc.u32 %v268, %v287
    %v294 = vadd.s32 %v290, 1
    %v295 = vsel %vm293, %v294, %v290
    %v296 = vadd.s32 %v291, %v295
    %v297 = vadd.s32 %v296, 536870912
    %v298 = vshrl.u32 %v297, 30
    %v299 = vshll.u32 %v298, 30
    %v300 = vsub.s32 %v296, %v299
    %vm301 = vcmp.lt.s32.totalorder %v300, 0
    %v302 = vsub.s32 0, %v300
    %v303 = vsel %vm301, %v302, %v300
    %v304 = vclz %v303
    %v305 = vsub.s32 %v304, 2
    %vm306 = vcmp.gt.s32.totalorder 0, %v305
    %v307 = vsel %vm306, 0, %v305
    %v308 = vsub.s32 32, %v307
    %v309 = vshll.u32 %v300, %v307
    %v310 = vshrl.u32 %v292, %v308
    %v311 = vor.u32 %v309, %v310
    %v312 = vsub.s32 4294967266, %v307
    %v313 = vadd.s32 %v312, 127
    %v314 = vshll.u32 %v313, 23
    %v315 = vor.u32 4788187, %v314
    %v316 = vand.u32 2147483647, %v315
    %v318 = vcvt.s32.f32 %v311
    %v319 = vmul.f32 %v318, %v316
    %v320 = vxor.u32 %v319, 2147483648
    %v321 = vsel %vm200, %v320, %v319
    %v322 = vsub.s32 4, %v298
    %v323 = vsel %vm200, %v322, %v298
    %v324 = vsel %vm199, %v22, %v321
    %v325 = vsel %vm199, 0, %v323
    %v326 = vmul.f32 %v324, %v324
    %v327 = vmul.f32 %v326, -0.001358992
    %v328 = vadd.f32 %v327, 0.041655596
    %v329 = vmul.f32 %v326, %v328
    %v330 = vadd.f32 %v329, -0.4999988
    %v331 = vmul.f32 %v326, %v330
    %v332 = vadd.f32 1.0, %v331
    %v333 = vmul.f32 %v324, %v324
    %v334 = vmul.f32 %v333, -0.00019511016
    %v335 = vadd.f32 %v334, 0.008332121
    %v336 = vmul.f32 %v333, %v335
    %v337 = vadd.f32 %v336, -0.16666654
    %v338 = vmul.f32 %v333, %v337
    %v339 = vadd.f32 %v338, 1.0
    %v340 = vmul.f32 %v339, %v324
    %vm341 = vweird.f32 %v22
    %v342 = vand.u32 %v325, 3
    %vm343 = vcmp.lt.s32.totalorder %v342, 2
    %vm344 = vcmp.eq.s32.totalorder %v342, 0
    %v345 = vxor.u32 %v340, 2147483648
    %v346 = vsel %vm344, %v332, %v345
    %vm347 = vcmp.eq.s32.totalorder %v342, 2
    %v348 = vxor.u32 %v332, 2147483648
    %v349 = vsel %vm347, %v348, %v340
    %v350 = vsel %vm343, %v346, %v349
    %v351 = vsel %vm341, nan, %v350
    %353 = vst [vmem:[#allocation1] ss:$2 sm:$0xff] %v351
    %v354 = vld.sshfl [vmem:[#allocation1] sm:$0xff pattern:$0x75316420]
    %v355 = vld.sshfl [vmem:[#allocation1 + $0x8] sm:$0xff pattern:$0x75316420]
    %v356 = vrot.slane %v354, 2
    %v357 = vrot.slane %v355, 2
    %360 = vst [vmem:[#allocation2] sm:$0xc0] %v356
    %361 = vst [vmem:[#allocation2 + $0x8] sm:$0xc0] %v357
    %362 = vst [vmem:[#allocation2 + $0x10] sm:$0x1] %v356
    %363 = vst [vmem:[#allocation2 + $0x18] sm:$0x1] %v357
    %v364 = vmul.f32 %v22, 2.0
    %v365 = vand.u32 2147483647, %v364
    %vm366 = vcmp.le.f32.partialorder %v365, 0.7853982
    %vm367 = vcmp.lt.s32.totalorder %v364, 0
    %v368 = vand.u32 %v364, 2139095040
    %v369 = vshrl.u32 %v368, 23
    %v370 = vsub.s32 %v369, 127
    %v371 = vand.u32 2147483647, %v364
    %v372 = vand.u32 %v371, 8388607
    %v373 = vor.u32 %v372, 8388608
    %v374 = vsub.s32 0, %v373
    %v375 = vadd.s32 %v370, 1
    %vm376 = vcmp.gt.s32.totalorder %v375, 0
    %v377 = vsel %vm376, %v375, 0
    %v378 = vshrl.u32 %v377, 5
    %v379 = vand.u32 %v377, 31
    %v380 = vsub.s32 32, %v379
    %v381 = vshrl.u32 683565275, %v380
    %v382 = vshll.u32 683565275, %v379
    %v383 = vshrl.u32 2475754826, %v380
    %v384 = vor.u32 %v382, %v383
    %v385 = vshll.u32 2475754826, %v379
    %v386 = vshrl.u32 2131351028, %v380
    %v387 = vor.u32 %v385, %v386
    %v388 = vshll.u32 2131351028, %v379
    %v389 = vshrl.u32 2102212464, %v380
    %v390 = vor.u32 %v388, %v389
    %v391 = vshll.u32 2102212464, %v379
    %v392 = vshrl.u32 920167782, %v380
    %v393 = vor.u32 %v391, %v392
    %v394 = vshll.u32 920167782, %v379
    %v395 = vshrl.u32 1326507024, %v380
    %v396 = vor.u32 %v394, %v395
    %vm397 = vcmp.lt.s32.totalorder %v378, 1
    %vm398 = vcmp.lt.s32.totalorder %v378, 2
    %vm399 = vcmp.lt.s32.totalorder %v378, 3
    %vm400 = vcmp.lt.s32.totalorder %v378, 4
    %v401 = vsel %vm397, %v381, %v384
    %v402 = vsel %vm400, %v390, 2102212464
    %v403 = vsel %vm399, %v387, %v402
    %v404 = vsel %vm398, %v401, %v403
    %v405 = vsel %vm397, %v384, %v387
    %v406 = vsel %vm400, %v393, 920167782
    %v407 = vsel %vm399, %v390, %v406
    %v408 = vsel %vm398, %v405, %v407
    %v409 = vsel %vm397, %v387, %v390
    %v410 = vsel %vm400, %v396, 1326507024
    %v411 = vsel %vm399, %v393, %v410
    %v412 = vsel %vm398, %v409, %v411
    %v413 = vshll.u32 %v373, 8
    %v414 = vand.u32 %v413, 65535
    %v415 = vshrl.u32 %v413, 16
    %v416 = vand.u32 %v412, 65535
    %v417 = vshrl.u32 %v412, 16
    %v418 = vmul.u32 %v414, %v416
    %v419 = vmul.u32 %v414, %v417
    %v420 = vmul.u32 %v415, %v416
    %v421 = vmul.u32 %v415, %v417
    %v422 = vshll.u32 %v419, 16
    %v423 = vshrl.u32 %v419, 16
    %v424 = vshll.u32 %v420, 16
    %v425 = vshrl.u32 %v420, 16
    %vm426 = vc.u32 %v418, %v422
    %v427 = vsel %vm426, 1, 0
    %v428 = vadd.s32 %v418, %v422
    %v429 = vadd.s32 %v421, %v427
    %vm430 = vc.u32 %v428, %v424
    %v431 = vsel %vm430, 1, 0
    %v432 = vadd.s32 %v428, %v424
    %v433 = vadd.s32 %v429, %v431
    %v434 = vadd.s32 %v433, %v423
    %v435 = vadd.s32 %v434, %v425
    %v436 = vand.u32 %v413, 65535
    %v437 = vshrl.u32 %v413, 16
    %v438 = vand.u32 %v408, 65535
    %v439 = vshrl.u32 %v408, 16
    %v440 = vmul.u32 %v436, %v438
    %v441 = vmul.u32 %v436, %v439
    %v442 = vmul.u32 %v437, %v438
    %v443 = vmul.u32 %v437, %v439
    %v444 = vshll.u32 %v441, 16
    %v445 = vshrl.u32 %v441, 16
    %v446 = vshll.u32 %v442, 16
    %v447 = vshrl.u32 %v442, 16
    %vm448 = vc.u32 %v440, %v444
    %v449 = vsel %vm448, 1, 0
    %v450 = vadd.s32 %v440, %v444
    %v451 = vadd.s32 %v443, %v449
    %vm452 = vc.u32 %v450, %v446
    %v453 = vsel %vm452, 1, 0
    %v454 = vadd.s32 %v450, %v446
    %v455 = vadd.s32 %v451, %v453
    %v456 = vadd.s32 %v455, %v445
    %v457 = vadd.s32 %v456, %v447
    %v458 = vmul.u32 %v413, %v404
    %v459 = vadd.s32 %v435, %v454
    %vm460 = vc.u32 %v435, %v454
    %v461 = vadd.s32 %v457, 1
    %v462 = vsel %vm460, %v461, %v457
    %v463 = vadd.s32 %v458, %v462
    %v464 = vadd.s32 %v463, 536870912
    %v465 = vshrl.u32 %v464, 30
    %v466 = vshll.u32 %v465, 30
    %v467 = vsub.s32 %v463, %v466
    %vm468 = vcmp.lt.s32.totalorder %v467, 0
    %v469 = vsub.s32 0, %v467
    %v470 = vsel %vm468, %v469, %v467
    %v471 = vclz %v470
    %v472 = vsub.s32 %v471, 2
    %vm473 = vcmp.gt.s32.totalorder 0, %v472
    %v474 = vsel %vm473, 0, %v472
    %v475 = vsub.s32 32, %v474
    %v476 = vshll.u32 %v467, %v474
    %v477 = vshrl.u32 %v459, %v475
    %v478 = vor.u32 %v476, %v477
    %v479 = vsub.s32 4294967266, %v474
    %v480 = vadd.s32 %v479, 127
    %v481 = vshll.u32 %v480, 23
    %v482 = vor.u32 4788187, %v481
    %v483 = vand.u32 2147483647, %v482
    %v485 = vcvt.s32.f32 %v478
    %v486 = vmul.f32 %v485, %v483
    %v487 = vxor.u32 %v486, 2147483648
    %v488 = vsel %vm367, %v487, %v486
    %v489 = vsub.s32 4, %v465
    %v490 = vsel %vm367, %v489, %v465
    %v491 = vsel %vm366, %v364, %v488
    %v492 = vsel %vm366, 0, %v490
    %v493 = vmul.f32 %v491, %v491
    %v494 = vmul.f32 %v493, -0.001358992
    %v495 = vadd.f32 %v494, 0.041655596
    %v496 = vmul.f32 %v493, %v495
    %v497 = vadd.f32 %v496, -0.4999988
    %v498 = vmul.f32 %v493, %v497
    %v499 = vadd.f32 1.0, %v498
    %v500 = vmul.f32 %v491, %v491
    %v501 = vmul.f32 %v500, -0.00019511016
    %v502 = vadd.f32 %v501, 0.008332121
    %v503 = vmul.f32 %v500, %v502
    %v504 = vadd.f32 %v503, -0.16666654
    %v505 = vmul.f32 %v500, %v504
    %v506 = vadd.f32 %v505, 1.0
    %v507 = vmul.f32 %v506, %v491
    %vm508 = vweird.f32 %v364
    %v509 = vadd.s32 %v492, 3
    %v510 = vand.u32 %v509, 3
    %vm511 = vcmp.lt.s32.totalorder %v510, 2
    %vm512 = vcmp.eq.s32.totalorder %v510, 0
    %v513 = vxor.u32 %v507, 2147483648
    %v514 = vsel %vm512, %v499, %v513
    %vm515 = vcmp.eq.s32.totalorder %v510, 2
    %v516 = vxor.u32 %v499, 2147483648
    %v517 = vsel %vm515, %v516, %v507
    %v518 = vsel %vm511, %v514, %v517
    %v519 = vsel %vm508, nan, %v518
    %521 = vst [vmem:[#allocation1] ss:$2 sm:$0xff] %v519
    %v522 = vld.sshfl [vmem:[#allocation1] sm:$0xff pattern:$0x75316420]
    %v523 = vld.sshfl [vmem:[#allocation1 + $0x8] sm:$0xff pattern:$0x75316420]
    %v524 = vrot.slane %v522, 7
    %v525 = vrot.slane %v523, 7
    %528 = vst [vmem:[#allocation2 + $0x10] sm:$0xe] %v524
    %529 = vst [vmem:[#allocation2 + $0x18] sm:$0xe] %v525
    %v530 = vand.u32 2147483647, %v364
    %vm531 = vcmp.le.f32.partialorder %v530, 0.7853982
    %vm532 = vcmp.lt.s32.totalorder %v364, 0
    %v533 = vand.u32 %v364, 2139095040
    %v534 = vshrl.u32 %v533, 23
    %v535 = vsub.s32 %v534, 127
    %v536 = vand.u32 2147483647, %v364
    %v537 = vand.u32 %v536, 8388607
    %v538 = vor.u32 %v537, 8388608
    %v539 = vsub.s32 0, %v538
    %v540 = vadd.s32 %v535, 1
    %vm541 = vcmp.gt.s32.totalorder %v540, 0
    %v542 = vsel %vm541, %v540, 0
    %v543 = vshrl.u32 %v542, 5
    %v544 = vand.u32 %v542, 31
    %v545 = vsub.s32 32, %v544
    %v546 = vshrl.u32 683565275, %v545
    %v547 = vshll.u32 683565275, %v544
    %v548 = vshrl.u32 2475754826, %v545
    %v549 = vor.u32 %v547, %v548
    %v550 = vshll.u32 2475754826, %v544
    %v551 = vshrl.u32 2131351028, %v545
    %v552 = vor.u32 %v550, %v551
    %v553 = vshll.u32 2131351028, %v544
    %v554 = vshrl.u32 2102212464, %v545
    %v555 = vor.u32 %v553, %v554
    %v556 = vshll.u32 2102212464, %v544
    %v557 = vshrl.u32 920167782, %v545
    %v558 = vor.u32 %v556, %v557
    %v559 = vshll.u32 920167782, %v544
    %v560 = vshrl.u32 1326507024, %v545
    %v561 = vor.u32 %v559, %v560
    %vm562 = vcmp.lt.s32.totalorder %v543, 1
    %vm563 = vcmp.lt.s32.totalorder %v543, 2
    %vm564 = vcmp.lt.s32.totalorder %v543, 3
    %vm565 = vcmp.lt.s32.totalorder %v543, 4
    %v566 = vsel %vm562, %v546, %v549
    %v567 = vsel %vm565, %v555, 2102212464
    %v568 = vsel %vm564, %v552, %v567
    %v569 = vsel %vm563, %v566, %v568
    %v570 = vsel %vm562, %v549, %v552
    %v571 = vsel %vm565, %v558, 920167782
    %v572 = vsel %vm564, %v555, %v571
    %v573 = vsel %vm563, %v570, %v572
    %v574 = vsel %vm562, %v552, %v555
    %v575 = vsel %vm565, %v561, 1326507024
    %v576 = vsel %vm564, %v558, %v575
    %v577 = vsel %vm563, %v574, %v576
    %v578 = vshll.u32 %v538, 8
    %v579 = vand.u32 %v578, 65535
    %v580 = vshrl.u32 %v578, 16
    %v581 = vand.u32 %v577, 65535
    %v582 = vshrl.u32 %v577, 16
    %v583 = vmul.u32 %v579, %v581
    %v584 = vmul.u32 %v579, %v582
    %v585 = vmul.u32 %v580, %v581
    %v586 = vmul.u32 %v580, %v582
    %v587 = vshll.u32 %v584, 16
    %v588 = vshrl.u32 %v584, 16
    %v589 = vshll.u32 %v585, 16
    %v590 = vshrl.u32 %v585, 16
    %vm591 = vc.u32 %v583, %v587
    %v592 = vsel %vm591, 1, 0
    %v593 = vadd.s32 %v583, %v587
    %v594 = vadd.s32 %v586, %v592
    %vm595 = vc.u32 %v593, %v589
    %v596 = vsel %vm595, 1, 0
    %v597 = vadd.s32 %v593, %v589
    %v598 = vadd.s32 %v594, %v596
    %v599 = vadd.s32 %v598, %v588
    %v600 = vadd.s32 %v599, %v590
    %v601 = vand.u32 %v578, 65535
    %v602 = vshrl.u32 %v578, 16
    %v603 = vand.u32 %v573, 65535
    %v604 = vshrl.u32 %v573, 16
    %v605 = vmul.u32 %v601, %v603
    %v606 = vmul.u32 %v601, %v604
    %v607 = vmul.u32 %v602, %v603
    %v608 = vmul.u32 %v602, %v604
    %v609 = vshll.u32 %v606, 16
    %v610 = vshrl.u32 %v606, 16
    %v611 = vshll.u32 %v607, 16
    %v612 = vshrl.u32 %v607, 16
    %vm613 = vc.u32 %v605, %v609
    %v614 = vsel %vm613, 1, 0
    %v615 = vadd.s32 %v605, %v609
    %v616 = vadd.s32 %v608, %v614
    %vm617 = vc.u32 %v615, %v611
    %v618 = vsel %vm617, 1, 0
    %v619 = vadd.s32 %v615, %v611
    %v620 = vadd.s32 %v616, %v618
    %v621 = vadd.s32 %v620, %v610
    %v622 = vadd.s32 %v621, %v612
    %v623 = vmul.u32 %v578, %v569
    %v624 = vadd.s32 %v600, %v619
    %vm625 = vc.u32 %v600, %v619
    %v626 = vadd.s32 %v622, 1
    %v627 = vsel %vm625, %v626, %v622
    %v628 = vadd.s32 %v623, %v627
    %v629 = vadd.s32 %v628, 536870912
    %v630 = vshrl.u32 %v629, 30
    %v631 = vshll.u32 %v630, 30
    %v632 = vsub.s32 %v628, %v631
    %vm633 = vcmp.lt.s32.totalorder %v632, 0
    %v634 = vsub.s32 0, %v632
    %v635 = vsel %vm633, %v634, %v632
    %v636 = vclz %v635
    %v637 = vsub.s32 %v636, 2
    %vm638 = vcmp.gt.s32.totalorder 0, %v637
    %v639 = vsel %vm638, 0, %v637
    %v640 = vsub.s32 32, %v639
    %v641 = vshll.u32 %v632, %v639
    %v642 = vshrl.u32 %v624, %v640
    %v643 = vor.u32 %v641, %v642
    %v644 = vsub.s32 4294967266, %v639
    %v645 = vadd.s32 %v644, 127
    %v646 = vshll.u32 %v645, 23
    %v647 = vor.u32 4788187, %v646
    %v648 = vand.u32 2147483647, %v647
    %v650 = vcvt.s32.f32 %v643
    %v651 = vmul.f32 %v650, %v648
    %v652 = vxor.u32 %v651, 2147483648
    %v653 = vsel %vm532, %v652, %v651
    %v654 = vsub.s32 4, %v630
    %v655 = vsel %vm532, %v654, %v630
    %v656 = vsel %vm531, %v364, %v653
    %v657 = vsel %vm531, 0, %v655
    %v658 = vmul.f32 %v656, %v656
    %v659 = vmul.f32 %v658, -0.001358992
    %v660 = vadd.f32 %v659, 0.041655596
    %v661 = vmul.f32 %v658, %v660
    %v662 = vadd.f32 %v661, -0.4999988
    %v663 = vmul.f32 %v658, %v662
    %v664 = vadd.f32 1.0, %v663
    %v665 = vmul.f32 %v656, %v656
    %v666 = vmul.f32 %v665, -0.00019511016
    %v667 = vadd.f32 %v666, 0.008332121
    %v668 = vmul.f32 %v665, %v667
    %v669 = vadd.f32 %v668, -0.16666654
    %v670 = vmul.f32 %v665, %v669
    %v671 = vadd.f32 %v670, 1.0
    %v672 = vmul.f32 %v671, %v656
    %vm673 = vweird.f32 %v364
    %v674 = vand.u32 %v657, 3
    %vm675 = vcmp.lt.s32.totalorder %v674, 2
    %vm676 = vcmp.eq.s32.totalorder %v674, 0
    %v677 = vxor.u32 %v672, 2147483648
    %v678 = vsel %vm676, %v664, %v677
    %vm679 = vcmp.eq.s32.totalorder %v674, 2
    %v680 = vxor.u32 %v664, 2147483648
    %v681 = vsel %vm679, %v680, %v672
    %v682 = vsel %vm675, %v678, %v681
    %v683 = vsel %vm673, nan, %v682
    %s685 = scalar_lea.vmem [#allocation1], 1
    %686 = vst [vmem:[%s685] ss:$2 sm:$0xff] %v683
    %v687 = vld.sshfl [vmem:[#allocation1] sm:$0xff pattern:$0x75316420]
    %v688 = vld.sshfl [vmem:[#allocation1 + $0x8] sm:$0xff pattern:$0x75316420]
    %691 = vst [vmem:[#allocation2 + $0x10] sm:$0x70] %v687
    %692 = vst [vmem:[#allocation2 + $0x18] sm:$0x70] %v688
    %v693 = vmul.f32 %v364, 2.0
    %v694 = vand.u32 2147483647, %v693
    %vm695 = vcmp.le.f32.partialorder %v694, 0.7853982
    %vm696 = vcmp.lt.s32.totalorder %v693, 0
    %v697 = vand.u32 %v693, 2139095040
    %v698 = vshrl.u32 %v697, 23
    %v699 = vsub.s32 %v698, 127
    %v700 = vand.u32 2147483647, %v693
    %v701 = vand.u32 %v700, 8388607
    %v702 = vor.u32 %v701, 8388608
    %v703 = vsub.s32 0, %v702
    %v704 = vadd.s32 %v699, 1
    %vm705 = vcmp.gt.s32.totalorder %v704, 0
    %v706 = vsel %vm705, %v704, 0
    %v707 = vshrl.u32 %v706, 5
    %v708 = vand.u32 %v706, 31
    %v709 = vsub.s32 32, %v708
    %v710 = vshrl.u32 683565275, %v709
    %v711 = vshll.u32 683565275, %v708
    %v712 = vshrl.u32 2475754826, %v709
    %v713 = vor.u32 %v711, %v712
    %v714 = vshll.u32 2475754826, %v708
    %v715 = vshrl.u32 2131351028, %v709
    %v716 = vor.u32 %v714, %v715
    %v717 = vshll.u32 2131351028, %v708
    %v718 = vshrl.u32 2102212464, %v709
    %v719 = vor.u32 %v717, %v718
    %v720 = vshll.u32 2102212464, %v708
    %v721 = vshrl.u32 920167782, %v709
    %v722 = vor.u32 %v720, %v721
    %v723 = vshll.u32 920167782, %v708
    %v724 = vshrl.u32 1326507024, %v709
    %v725 = vor.u32 %v723, %v724
    %vm726 = vcmp.lt.s32.totalorder %v707, 1
    %vm727 = vcmp.lt.s32.totalorder %v707, 2
    %vm728 = vcmp.lt.s32.totalorder %v707, 3
    %vm729 = vcmp.lt.s32.totalorder %v707, 4
    %v730 = vsel %vm726, %v710, %v713
    %v731 = vsel %vm729, %v719, 2102212464
    %v732 = vsel %vm728, %v716, %v731
    %v733 = vsel %vm727, %v730, %v732
    %v734 = vsel %vm726, %v713, %v716
    %v735 = vsel %vm729, %v722, 920167782
    %v736 = vsel %vm728, %v719, %v735
    %v737 = vsel %vm727, %v734, %v736
    %v738 = vsel %vm726, %v716, %v719
    %v739 = vsel %vm729, %v725, 1326507024
    %v740 = vsel %vm728, %v722, %v739
    %v741 = vsel %vm727, %v738, %v740
    %v742 = vshll.u32 %v702, 8
    %v743 = vand.u32 %v742, 65535
    %v744 = vshrl.u32 %v742, 16
    %v745 = vand.u32 %v741, 65535
    %v746 = vshrl.u32 %v741, 16
    %v747 = vmul.u32 %v743, %v745
    %v748 = vmul.u32 %v743, %v746
    %v749 = vmul.u32 %v744, %v745
    %v750 = vmul.u32 %v744, %v746
    %v751 = vshll.u32 %v748, 16
    %v752 = vshrl.u32 %v748, 16
    %v753 = vshll.u32 %v749, 16
    %v754 = vshrl.u32 %v749, 16
    %vm755 = vc.u32 %v747, %v751
    %v756 = vsel %vm755, 1, 0
    %v757 = vadd.s32 %v747, %v751
    %v758 = vadd.s32 %v750, %v756
    %vm759 = vc.u32 %v757, %v753
    %v760 = vsel %vm759, 1, 0
    %v761 = vadd.s32 %v757, %v753
    %v762 = vadd.s32 %v758, %v760
    %v763 = vadd.s32 %v762, %v752
    %v764 = vadd.s32 %v763, %v754
    %v765 = vand.u32 %v742, 65535
    %v766 = vshrl.u32 %v742, 16
    %v767 = vand.u32 %v737, 65535
    %v768 = vshrl.u32 %v737, 16
    %v769 = vmul.u32 %v765, %v767
    %v770 = vmul.u32 %v765, %v768
    %v771 = vmul.u32 %v766, %v767
    %v772 = vmul.u32 %v766, %v768
    %v773 = vshll.u32 %v770, 16
    %v774 = vshrl.u32 %v770, 16
    %v775 = vshll.u32 %v771, 16
    %v776 = vshrl.u32 %v771, 16
    %vm777 = vc.u32 %v769, %v773
    %v778 = vsel %vm777, 1, 0
    %v779 = vadd.s32 %v769, %v773
    %v780 = vadd.s32 %v772, %v778
    %vm781 = vc.u32 %v779, %v775
    %v782 = vsel %vm781, 1, 0
    %v783 = vadd.s32 %v779, %v775
    %v784 = vadd.s32 %v780, %v782
    %v785 = vadd.s32 %v784, %v774
    %v786 = vadd.s32 %v785, %v776
    %v787 = vmul.u32 %v742, %v733
    %v788 = vadd.s32 %v764, %v783
    %vm789 = vc.u32 %v764, %v783
    %v790 = vadd.s32 %v786, 1
    %v791 = vsel %vm789, %v790, %v786
    %v792 = vadd.s32 %v787, %v791
    %v793 = vadd.s32 %v792, 536870912
    %v794 = vshrl.u32 %v793, 30
    %v795 = vshll.u32 %v794, 30
    %v796 = vsub.s32 %v792, %v795
    %vm797 = vcmp.lt.s32.totalorder %v796, 0
    %v798 = vsub.s32 0, %v796
    %v799 = vsel %vm797, %v798, %v796
    %v800 = vclz %v799
    %v801 = vsub.s32 %v800, 2
    %vm802 = vcmp.gt.s32.totalorder 0, %v801
    %v803 = vsel %vm802, 0, %v801
    %v804 = vsub.s32 32, %v803
    %v805 = vshll.u32 %v796, %v803
    %v806 = vshrl.u32 %v788, %v804
    %v807 = vor.u32 %v805, %v806
    %v808 = vsub.s32 4294967266, %v803
    %v809 = vadd.s32 %v808, 127
    %v810 = vshll.u32 %v809, 23
    %v811 = vor.u32 4788187, %v810
    %v812 = vand.u32 2147483647, %v811
    %v814 = vcvt.s32.f32 %v807
    %v815 = vmul.f32 %v814, %v812
    %v816 = vxor.u32 %v815, 2147483648
    %v817 = vsel %vm696, %v816, %v815
    %v818 = vsub.s32 4, %v794
    %v819 = vsel %vm696, %v818, %v794
    %v820 = vsel %vm695, %v693, %v817
    %v821 = vsel %vm695, 0, %v819
    %v822 = vmul.f32 %v820, %v820
    %v823 = vmul.f32 %v822, -0.001358992
    %v824 = vadd.f32 %v823, 0.041655596
    %v825 = vmul.f32 %v822, %v824
    %v826 = vadd.f32 %v825, -0.4999988
    %v827 = vmul.f32 %v822, %v826
    %v828 = vadd.f32 1.0, %v827
    %v829 = vmul.f32 %v820, %v820
    %v830 = vmul.f32 %v829, -0.00019511016
    %v831 = vadd.f32 %v830, 0.008332121
    %v832 = vmul.f32 %v829, %v831
    %v833 = vadd.f32 %v832, -0.16666654
    %v834 = vmul.f32 %v829, %v833
    %v835 = vadd.f32 %v834, 1.0
    %v836 = vmul.f32 %v835, %v820
    %vm837 = vweird.f32 %v693
    %v838 = vadd.s32 %v821, 3
    %v839 = vand.u32 %v838, 3
    %vm840 = vcmp.lt.s32.totalorder %v839, 2
    %vm841 = vcmp.eq.s32.totalorder %v839, 0
    %v842 = vxor.u32 %v836, 2147483648
    %v843 = vsel %vm841, %v828, %v842
    %vm844 = vcmp.eq.s32.totalorder %v839, 2
    %v845 = vxor.u32 %v828, 2147483648
    %v846 = vsel %vm844, %v845, %v836
    %v847 = vsel %vm840, %v843, %v846
    %v848 = vsel %vm837, nan, %v847
    %850 = vst [vmem:[#allocation1] ss:$2 sm:$0xff] %v848
    %v851 = vld.sshfl [vmem:[#allocation1] sm:$0xff pattern:$0x75316420]
    %v852 = vld.sshfl [vmem:[#allocation1 + $0x8] sm:$0xff pattern:$0x75316420]
    %v853 = vrot.slane %v851, 1
    %v854 = vrot.slane %v852, 1
    %857 = vst [vmem:[#allocation2 + $0x10] sm:$0x80] %v853
    %858 = vst [vmem:[#allocation2 + $0x18] sm:$0x80] %v854
    %859 = vst [vmem:[#allocation2 + $0x20] sm:$0x3] %v853
    %860 = vst [vmem:[#allocation2 + $0x28] sm:$0x3] %v854
    %v861 = vand.u32 2147483647, %v693
    %vm862 = vcmp.le.f32.partialorder %v861, 0.7853982
    %vm863 = vcmp.lt.s32.totalorder %v693, 0
    %v864 = vand.u32 %v693, 2139095040
    %v865 = vshrl.u32 %v864, 23
    %v866 = vsub.s32 %v865, 127
    %v867 = vand.u32 2147483647, %v693
    %v868 = vand.u32 %v867, 8388607
    %v869 = vor.u32 %v868, 8388608
    %v870 = vsub.s32 0, %v869
    %v871 = vadd.s32 %v866, 1
    %vm872 = vcmp.gt.s32.totalorder %v871, 0
    %v873 = vsel %vm872, %v871, 0
    %v874 = vshrl.u32 %v873, 5
    %v875 = vand.u32 %v873, 31
    %v876 = vsub.s32 32, %v875
    %v877 = vshrl.u32 683565275, %v876
    %v878 = vshll.u32 683565275, %v875
    %v879 = vshrl.u32 2475754826, %v876
    %v880 = vor.u32 %v878, %v879
    %v881 = vshll.u32 2475754826, %v875
    %v882 = vshrl.u32 2131351028, %v876
    %v883 = vor.u32 %v881, %v882
    %v884 = vshll.u32 2131351028, %v875
    %v885 = vshrl.u32 2102212464, %v876
    %v886 = vor.u32 %v884, %v885
    %v887 = vshll.u32 2102212464, %v875
    %v888 = vshrl.u32 920167782, %v876
    %v889 = vor.u32 %v887, %v888
    %v890 = vshll.u32 920167782, %v875
    %v891 = vshrl.u32 1326507024, %v876
    %v892 = vor.u32 %v890, %v891
    %vm893 = vcmp.lt.s32.totalorder %v874, 1
    %vm894 = vcmp.lt.s32.totalorder %v874, 2
    %vm895 = vcmp.lt.s32.totalorder %v874, 3
    %vm896 = vcmp.lt.s32.totalorder %v874, 4
    %v897 = vsel %vm893, %v877, %v880
    %v898 = vsel %vm896, %v886, 2102212464
    %v899 = vsel %vm895, %v883, %v898
    %v900 = vsel %vm894, %v897, %v899
    %v901 = vsel %vm893, %v880, %v883
    %v902 = vsel %vm896, %v889, 920167782
    %v903 = vsel %vm895, %v886, %v902
    %v904 = vsel %vm894, %v901, %v903
    %v905 = vsel %vm893, %v883, %v886
    %v906 = vsel %vm896, %v892, 1326507024
    %v907 = vsel %vm895, %v889, %v906
    %v908 = vsel %vm894, %v905, %v907
    %v909 = vshll.u32 %v869, 8
    %v910 = vand.u32 %v909, 65535
    %v911 = vshrl.u32 %v909, 16
    %v912 = vand.u32 %v908, 65535
    %v913 = vshrl.u32 %v908, 16
    %v914 = vmul.u32 %v910, %v912
    %v915 = vmul.u32 %v910, %v913
    %v916 = vmul.u32 %v911, %v912
    %v917 = vmul.u32 %v911, %v913
    %v918 = vshll.u32 %v915, 16
    %v919 = vshrl.u32 %v915, 16
    %v920 = vshll.u32 %v916, 16
    %v921 = vshrl.u32 %v916, 16
    %vm922 = vc.u32 %v914, %v918
    %v923 = vsel %vm922, 1, 0
    %v924 = vadd.s32 %v914, %v918
    %v925 = vadd.s32 %v917, %v923
    %vm926 = vc.u32 %v924, %v920
    %v927 = vsel %vm926, 1, 0
    %v928 = vadd.s32 %v924, %v920
    %v929 = vadd.s32 %v925, %v927
    %v930 = vadd.s32 %v929, %v919
    %v931 = vadd.s32 %v930, %v921
    %v932 = vand.u32 %v909, 65535
    %v933 = vshrl.u32 %v909, 16
    %v934 = vand.u32 %v904, 65535
    %v935 = vshrl.u32 %v904, 16
    %v936 = vmul.u32 %v932, %v934
    %v937 = vmul.u32 %v932, %v935
    %v938 = vmul.u32 %v933, %v934
    %v939 = vmul.u32 %v933, %v935
    %v940 = vshll.u32 %v937, 16
    %v941 = vshrl.u32 %v937, 16
    %v942 = vshll.u32 %v938, 16
    %v943 = vshrl.u32 %v938, 16
    %vm944 = vc.u32 %v936, %v940
    %v945 = vsel %vm944, 1, 0
    %v946 = vadd.s32 %v936, %v940
    %v947 = vadd.s32 %v939, %v945
    %vm948 = vc.u32 %v946, %v942
    %v949 = vsel %vm948, 1, 0
    %v950 = vadd.s32 %v946, %v942
    %v951 = vadd.s32 %v947, %v949
    %v952 = vadd.s32 %v951, %v941
    %v953 = vadd.s32 %v952, %v943
    %v954 = vmul.u32 %v909, %v900
    %v955 = vadd.s32 %v931, %v950
    %vm956 = vc.u32 %v931, %v950
    %v957 = vadd.s32 %v953, 1
    %v958 = vsel %vm956, %v957, %v953
    %v959 = vadd.s32 %v954, %v958
    %v960 = vadd.s32 %v959, 536870912
    %v961 = vshrl.u32 %v960, 30
    %v962 = vshll.u32 %v961, 30
    %v963 = vsub.s32 %v959, %v962
    %vm964 = vcmp.lt.s32.totalorder %v963, 0
    %v965 = vsub.s32 0, %v963
    %v966 = vsel %vm964, %v965, %v963
    %v967 = vclz %v966
    %v968 = vsub.s32 %v967, 2
    %vm969 = vcmp.gt.s32.totalorder 0, %v968
    %v970 = vsel %vm969, 0, %v968
    %v971 = vsub.s32 32, %v970
    %v972 = vshll.u32 %v963, %v970
    %v973 = vshrl.u32 %v955, %v971
    %v974 = vor.u32 %v972, %v973
    %v975 = vsub.s32 4294967266, %v970
    %v976 = vadd.s32 %v975, 127
    %v977 = vshll.u32 %v976, 23
    %v978 = vor.u32 4788187, %v977
    %v979 = vand.u32 2147483647, %v978
    %v981 = vcvt.s32.f32 %v974
    %v982 = vmul.f32 %v981, %v979
    %v983 = vxor.u32 %v982, 2147483648
    %v984 = vsel %vm863, %v983, %v982
    %v985 = vsub.s32 4, %v961
    %v986 = vsel %vm863, %v985, %v961
    %v987 = vsel %vm862, %v693, %v984
    %v988 = vsel %vm862, 0, %v986
    %v989 = vmul.f32 %v987, %v987
    %v990 = vmul.f32 %v989, -0.001358992
    %v991 = vadd.f32 %v990, 0.041655596
    %v992 = vmul.f32 %v989, %v991
    %v993 = vadd.f32 %v992, -0.4999988
    %v994 = vmul.f32 %v989, %v993
    %v995 = vadd.f32 1.0, %v994
    %v996 = vmul.f32 %v987, %v987
    %v997 = vmul.f32 %v996, -0.00019511016
    %v998 = vadd.f32 %v997, 0.008332121
    %v999 = vmul.f32 %v996, %v998
    %v1000 = vadd.f32 %v999, -0.16666654
    %v1001 = vmul.f32 %v996, %v1000
    %v1002 = vadd.f32 %v1001, 1.0
    %v1003 = vmul.f32 %v1002, %v987
    %vm1004 = vweird.f32 %v693
    %v1005 = vand.u32 %v988, 3
    %vm1006 = vcmp.lt.s32.totalorder %v1005, 2
    %vm1007 = vcmp.eq.s32.totalorder %v1005, 0
    %v1008 = vxor.u32 %v1003, 2147483648
    %v1009 = vsel %vm1007, %v995, %v1008
    %vm1010 = vcmp.eq.s32.totalorder %v1005, 2
    %v1011 = vxor.u32 %v995, 2147483648
    %v1012 = vsel %vm1010, %v1011, %v1003
    %v1013 = vsel %vm1006, %v1009, %v1012
    %v1014 = vsel %vm1004, nan, %v1013
    %1016 = vst [vmem:[#allocation1] ss:$2 sm:$0xff] %v1014
    %v1017 = vld.sshfl [vmem:[#allocation1] sm:$0xff pattern:$0x75316420]
    %v1018 = vld.sshfl [vmem:[#allocation1 + $0x8] sm:$0xff pattern:$0x75316420]
    %v1019 = vrot.slane %v1017, 6
    %v1020 = vrot.slane %v1018, 6
    %1023 = vst [vmem:[#allocation2 + $0x20] sm:$0x1c] %v1019
    %1024 = vst [vmem:[#allocation2 + $0x28] sm:$0x1c] %v1020
    %v1025 = vmul.f32 %v693, 2.0
    %v1026 = vand.u32 2147483647, %v1025
    %vm1027 = vcmp.le.f32.partialorder %v1026, 0.7853982
    %vm1028 = vcmp.lt.s32.totalorder %v1025, 0
    %v1029 = vand.u32 %v1025, 2139095040
    %v1030 = vshrl.u32 %v1029, 23
    %v1031 = vsub.s32 %v1030, 127
    %v1032 = vand.u32 2147483647, %v1025
    %v1033 = vand.u32 %v1032, 8388607
    %v1034 = vor.u32 %v1033, 8388608
    %v1035 = vsub.s32 0, %v1034
    %v1036 = vadd.s32 %v1031, 1
    %vm1037 = vcmp.gt.s32.totalorder %v1036, 0
    %v1038 = vsel %vm1037, %v1036, 0
    %v1039 = vshrl.u32 %v1038, 5
    %v1040 = vand.u32 %v1038, 31
    %v1041 = vsub.s32 32, %v1040
    %v1042 = vshrl.u32 683565275, %v1041
    %v1043 = vshll.u32 683565275, %v1040
    %v1044 = vshrl.u32 2475754826, %v1041
    %v1045 = vor.u32 %v1043, %v1044
    %v1046 = vshll.u32 2475754826, %v1040
    %v1047 = vshrl.u32 2131351028, %v1041
    %v1048 = vor.u32 %v1046, %v1047
    %v1049 = vshll.u32 2131351028, %v1040
    %v1050 = vshrl.u32 2102212464, %v1041
    %v1051 = vor.u32 %v1049, %v1050
    %v1052 = vshll.u32 2102212464, %v1040
    %v1053 = vshrl.u32 920167782, %v1041
    %v1054 = vor.u32 %v1052, %v1053
    %v1055 = vshll.u32 920167782, %v1040
    %v1056 = vshrl.u32 1326507024, %v1041
    %v1057 = vor.u32 %v1055, %v1056
    %vm1058 = vcmp.lt.s32.totalorder %v1039, 1
    %vm1059 = vcmp.lt.s32.totalorder %v1039, 2
    %vm1060 = vcmp.lt.s32.totalorder %v1039, 3
    %vm1061 = vcmp.lt.s32.totalorder %v1039, 4
    %v1062 = vsel %vm1058, %v1042, %v1045
    %v1063 = vsel %vm1061, %v1051, 2102212464
    %v1064 = vsel %vm1060, %v1048, %v1063
    %v1065 = vsel %vm1059, %v1062, %v1064
    %v1066 = vsel %vm1058, %v1045, %v1048
    %v1067 = vsel %vm1061, %v1054, 920167782
    %v1068 = vsel %vm1060, %v1051, %v1067
    %v1069 = vsel %vm1059, %v1066, %v1068
    %v1070 = vsel %vm1058, %v1048, %v1051
    %v1071 = vsel %vm1061, %v1057, 1326507024
    %v1072 = vsel %vm1060, %v1054, %v1071
    %v1073 = vsel %vm1059, %v1070, %v1072
    %v1074 = vshll.u32 %v1034, 8
    %v1075 = vand.u32 %v1074, 65535
    %v1076 = vshrl.u32 %v1074, 16
    %v1077 = vand.u32 %v1073, 65535
    %v1078 = vshrl.u32 %v1073, 16
    %v1079 = vmul.u32 %v1075, %v1077
    %v1080 = vmul.u32 %v1075, %v1078
    %v1081 = vmul.u32 %v1076, %v1077
    %v1082 = vmul.u32 %v1076, %v1078
    %v1083 = vshll.u32 %v1080, 16
    %v1084 = vshrl.u32 %v1080, 16
    %v1085 = vshll.u32 %v1081, 16
    %v1086 = vshrl.u32 %v1081, 16
    %vm1087 = vc.u32 %v1079, %v1083
    %v1088 = vsel %vm1087, 1, 0
    %v1089 = vadd.s32 %v1079, %v1083
    %v1090 = vadd.s32 %v1082, %v1088
    %vm1091 = vc.u32 %v1089, %v1085
    %v1092 = vsel %vm1091, 1, 0
    %v1093 = vadd.s32 %v1089, %v1085
    %v1094 = vadd.s32 %v1090, %v1092
    %v1095 = vadd.s32 %v1094, %v1084
    %v1096 = vadd.s32 %v1095, %v1086
    %v1097 = vand.u32 %v1074, 65535
    %v1098 = vshrl.u32 %v1074, 16
    %v1099 = vand.u32 %v1069, 65535
    %v1100 = vshrl.u32 %v1069, 16
    %v1101 = vmul.u32 %v1097, %v1099
    %v1102 = vmul.u32 %v1097, %v1100
    %v1103 = vmul.u32 %v1098, %v1099
    %v1104 = vmul.u32 %v1098, %v1100
    %v1105 = vshll.u32 %v1102, 16
    %v1106 = vshrl.u32 %v1102, 16
    %v1107 = vshll.u32 %v1103, 16
    %v1108 = vshrl.u32 %v1103, 16
    %vm1109 = vc.u32 %v1101, %v1105
    %v1110 = vsel %vm1109, 1, 0
    %v1111 = vadd.s32 %v1101, %v1105
    %v1112 = vadd.s32 %v1104, %v1110
    %vm1113 = vc.u32 %v1111, %v1107
    %v1114 = vsel %vm1113, 1, 0
    %v1115 = vadd.s32 %v1111, %v1107
    %v1116 = vadd.s32 %v1112, %v1114
    %v1117 = vadd.s32 %v1116, %v1106
    %v1118 = vadd.s32 %v1117, %v1108
    %v1119 = vmul.u32 %v1074, %v1065
    %v1120 = vadd.s32 %v1096, %v1115
    %vm1121 = vc.u32 %v1096, %v1115
    %v1122 = vadd.s32 %v1118, 1
    %v1123 = vsel %vm1121, %v1122, %v1118
    %v1124 = vadd.s32 %v1119, %v1123
    %v1125 = vadd.s32 %v1124, 536870912
    %v1126 = vshrl.u32 %v1125, 30
    %v1127 = vshll.u32 %v1126, 30
    %v1128 = vsub.s32 %v1124, %v1127
    %vm1129 = vcmp.lt.s32.totalorder %v1128, 0
    %v1130 = vsub.s32 0, %v1128
    %v1131 = vsel %vm1129, %v1130, %v1128
    %v1132 = vclz %v1131
    %v1133 = vsub.s32 %v1132, 2
    %vm1134 = vcmp.gt.s32.totalorder 0, %v1133
    %v1135 = vsel %vm1134, 0, %v1133
    %v1136 = vsub.s32 32, %v1135
    %v1137 = vshll.u32 %v1128, %v1135
    %v1138 = vshrl.u32 %v1120, %v1136
    %v1139 = vor.u32 %v1137, %v1138
    %v1140 = vsub.s32 4294967266, %v1135
    %v1141 = vadd.s32 %v1140, 127
    %v1142 = vshll.u32 %v1141, 23
    %v1143 = vor.u32 4788187, %v1142
    %v1144 = vand.u32 2147483647, %v1143
    %v1146 = vcvt.s32.f32 %v1139
    %v1147 = vmul.f32 %v1146, %v1144
    %v1148 = vxor.u32 %v1147, 2147483648
    %v1149 = vsel %vm1028, %v1148, %v1147
    %v1150 = vsub.s32 4, %v1126
    %v1151 = vsel %vm1028, %v1150, %v1126
    %v1152 = vsel %vm1027, %v1025, %v1149
    %v1153 = vsel %vm1027, 0, %v1151
    %v1154 = vmul.f32 %v1152, %v1152
    %v1155 = vmul.f32 %v1154, -0.001358992
    %v1156 = vadd.f32 %v1155, 0.041655596
    %v1157 = vmul.f32 %v1154, %v1156
    %v1158 = vadd.f32 %v1157, -0.4999988
    %v1159 = vmul.f32 %v1154, %v1158
    %v1160 = vadd.f32 1.0, %v1159
    %v1161 = vmul.f32 %v1152, %v1152
    %v1162 = vmul.f32 %v1161, -0.00019511016
    %v1163 = vadd.f32 %v1162, 0.008332121
    %v1164 = vmul.f32 %v1161, %v1163
    %v1165 = vadd.f32 %v1164, -0.16666654
    %v1166 = vmul.f32 %v1161, %v1165
    %v1167 = vadd.f32 %v1166, 1.0
    %v1168 = vmul.f32 %v1167, %v1152
    %vm1169 = vweird.f32 %v1025
    %v1170 = vadd.s32 %v1153, 3
    %v1171 = vand.u32 %v1170, 3
    %vm1172 = vcmp.lt.s32.totalorder %v1171, 2
    %vm1173 = vcmp.eq.s32.totalorder %v1171, 0
    %v1174 = vxor.u32 %v1168, 2147483648
    %v1175 = vsel %vm1173, %v1160, %v1174
    %vm1176 = vcmp.eq.s32.totalorder %v1171, 2
    %v1177 = vxor.u32 %v1160, 2147483648
    %v1178 = vsel %vm1176, %v1177, %v1168
    %v1179 = vsel %vm1172, %v1175, %v1178
    %v1180 = vsel %vm1169, nan, %v1179
    %1182 = vst [vmem:[#allocation1] ss:$2 sm:$0xff] %v1180
    %v1183 = vld.sshfl [vmem:[#allocation1] sm:$0xff pattern:$0x75316420]
    %v1184 = vld.sshfl [vmem:[#allocation1 + $0x8] sm:$0xff pattern:$0x75316420]
    %v1185 = vrot.slane %v1183, 3
    %v1186 = vrot.slane %v1184, 3
    %1189 = vst [vmem:[#allocation2 + $0x20] sm:$0xe0] %v1185
    %1190 = vst [vmem:[#allocation2 + $0x28] sm:$0xe0] %v1186
    %v1191 = vand.u32 2147483647, %v1025
    %vm1192 = vcmp.le.f32.partialorder %v1191, 0.7853982
    %vm1193 = vcmp.lt.s32.totalorder %v1025, 0
    %v1194 = vand.u32 %v1025, 2139095040
    %v1195 = vshrl.u32 %v1194, 23
    %v1196 = vsub.s32 %v1195, 127
    %v1197 = vand.u32 2147483647, %v1025
    %v1198 = vand.u32 %v1197, 8388607
    %v1199 = vor.u32 %v1198, 8388608
    %v1200 = vsub.s32 0, %v1199
    %v1201 = vadd.s32 %v1196, 1
    %vm1202 = vcmp.gt.s32.totalorder %v1201, 0
    %v1203 = vsel %vm1202, %v1201, 0
    %v1204 = vshrl.u32 %v1203, 5
    %v1205 = vand.u32 %v1203, 31
    %v1206 = vsub.s32 32, %v1205
    %v1207 = vshrl.u32 683565275, %v1206
    %v1208 = vshll.u32 683565275, %v1205
    %v1209 = vshrl.u32 2475754826, %v1206
    %v1210 = vor.u32 %v1208, %v1209
    %v1211 = vshll.u32 2475754826, %v1205
    %v1212 = vshrl.u32 2131351028, %v1206
    %v1213 = vor.u32 %v1211, %v1212
    %v1214 = vshll.u32 2131351028, %v1205
    %v1215 = vshrl.u32 2102212464, %v1206
    %v1216 = vor.u32 %v1214, %v1215
    %v1217 = vshll.u32 2102212464, %v1205
    %v1218 = vshrl.u32 920167782, %v1206
    %v1219 = vor.u32 %v1217, %v1218
    %v1220 = vshll.u32 920167782, %v1205
    %v1221 = vshrl.u32 1326507024, %v1206
    %v1222 = vor.u32 %v1220, %v1221
    %vm1223 = vcmp.lt.s32.totalorder %v1204, 1
    %vm1224 = vcmp.lt.s32.totalorder %v1204, 2
    %vm1225 = vcmp.lt.s32.totalorder %v1204, 3
    %vm1226 = vcmp.lt.s32.totalorder %v1204, 4
    %v1227 = vsel %vm1223, %v1207, %v1210
    %v1228 = vsel %vm1226, %v1216, 2102212464
    %v1229 = vsel %vm1225, %v1213, %v1228
    %v1230 = vsel %vm1224, %v1227, %v1229
    %v1231 = vsel %vm1223, %v1210, %v1213
    %v1232 = vsel %vm1226, %v1219, 920167782
    %v1233 = vsel %vm1225, %v1216, %v1232
    %v1234 = vsel %vm1224, %v1231, %v1233
    %v1235 = vsel %vm1223, %v1213, %v1216
    %v1236 = vsel %vm1226, %v1222, 1326507024
    %v1237 = vsel %vm1225, %v1219, %v1236
    %v1238 = vsel %vm1224, %v1235, %v1237
    %v1239 = vshll.u32 %v1199, 8
    %v1240 = vand.u32 %v1239, 65535
    %v1241 = vshrl.u32 %v1239, 16
    %v1242 = vand.u32 %v1238, 65535
    %v1243 = vshrl.u32 %v1238, 16
    %v1244 = vmul.u32 %v1240, %v1242
    %v1245 = vmul.u32 %v1240, %v1243
    %v1246 = vmul.u32 %v1241, %v1242
    %v1247 = vmul.u32 %v1241, %v1243
    %v1248 = vshll.u32 %v1245, 16
    %v1249 = vshrl.u32 %v1245, 16
    %v1250 = vshll.u32 %v1246, 16
    %v1251 = vshrl.u32 %v1246, 16
    %vm1252 = vc.u32 %v1244, %v1248
    %v1253 = vsel %vm1252, 1, 0
    %v1254 = vadd.s32 %v1244, %v1248
    %v1255 = vadd.s32 %v1247, %v1253
    %vm1256 = vc.u32 %v1254, %v1250
    %v1257 = vsel %vm1256, 1, 0
    %v1258 = vadd.s32 %v1254, %v1250
    %v1259 = vadd.s32 %v1255, %v1257
    %v1260 = vadd.s32 %v1259, %v1249
    %v1261 = vadd.s32 %v1260, %v1251
    %v1262 = vand.u32 %v1239, 65535
    %v1263 = vshrl.u32 %v1239, 16
    %v1264 = vand.u32 %v1234, 65535
    %v1265 = vshrl.u32 %v1234, 16
    %v1266 = vmul.u32 %v1262, %v1264
    %v1267 = vmul.u32 %v1262, %v1265
    %v1268 = vmul.u32 %v1263, %v1264
    %v1269 = vmul.u32 %v1263, %v1265
    %v1270 = vshll.u32 %v1267, 16
    %v1271 = vshrl.u32 %v1267, 16
    %v1272 = vshll.u32 %v1268, 16
    %v1273 = vshrl.u32 %v1268, 16
    %vm1274 = vc.u32 %v1266, %v1270
    %v1275 = vsel %vm1274, 1, 0
    %v1276 = vadd.s32 %v1266, %v1270
    %v1277 = vadd.s32 %v1269, %v1275
    %vm1278 = vc.u32 %v1276, %v1272
    %v1279 = vsel %vm1278, 1, 0
    %v1280 = vadd.s32 %v1276, %v1272
    %v1281 = vadd.s32 %v1277, %v1279
    %v1282 = vadd.s32 %v1281, %v1271
    %v1283 = vadd.s32 %v1282, %v1273
    %v1284 = vmul.u32 %v1239, %v1230
    %v1285 = vadd.s32 %v1261, %v1280
    %vm1286 = vc.u32 %v1261, %v1280
    %v1287 = vadd.s32 %v1283, 1
    %v1288 = vsel %vm1286, %v1287, %v1283
    %v1289 = vadd.s32 %v1284, %v1288
    %v1290 = vadd.s32 %v1289, 536870912
    %v1291 = vshrl.u32 %v1290, 30
    %v1292 = vshll.u32 %v1291, 30
    %v1293 = vsub.s32 %v1289, %v1292
    %vm1294 = vcmp.lt.s32.totalorder %v1293, 0
    %v1295 = vsub.s32 0, %v1293
    %v1296 = vsel %vm1294, %v1295, %v1293
    %v1297 = vclz %v1296
    %v1298 = vsub.s32 %v1297, 2
    %vm1299 = vcmp.gt.s32.totalorder 0, %v1298
    %v1300 = vsel %vm1299, 0, %v1298
    %v1301 = vsub.s32 32, %v1300
    %v1302 = vshll.u32 %v1293, %v1300
    %v1303 = vshrl.u32 %v1285, %v1301
    %v1304 = vor.u32 %v1302, %v1303
    %v1305 = vsub.s32 4294967266, %v1300
    %v1306 = vadd.s32 %v1305, 127
    %v1307 = vshll.u32 %v1306, 23
    %v1308 = vor.u32 4788187, %v1307
    %v1309 = vand.u32 2147483647, %v1308
    %v1311 = vcvt.s32.f32 %v1304
    %v1312 = vmul.f32 %v1311, %v1309
    %v1313 = vxor.u32 %v1312, 2147483648
    %v1314 = vsel %vm1193, %v1313, %v1312
    %v1315 = vsub.s32 4, %v1291
    %v1316 = vsel %vm1193, %v1315, %v1291
    %v1317 = vsel %vm1192, %v1025, %v1314
    %v1318 = vsel %vm1192, 0, %v1316
    %v1319 = vmul.f32 %v1317, %v1317
    %v1320 = vmul.f32 %v1319, -0.001358992
    %v1321 = vadd.f32 %v1320, 0.041655596
    %v1322 = vmul.f32 %v1319, %v1321
    %v1323 = vadd.f32 %v1322, -0.4999988
    %v1324 = vmul.f32 %v1319, %v1323
    %v1325 = vadd.f32 1.0, %v1324
    %v1326 = vmul.f32 %v1317, %v1317
    %v1327 = vmul.f32 %v1326, -0.00019511016
    %v1328 = vadd.f32 %v1327, 0.008332121
    %v1329 = vmul.f32 %v1326, %v1328
    %v1330 = vadd.f32 %v1329, -0.16666654
    %v1331 = vmul.f32 %v1326, %v1330
    %v1332 = vadd.f32 %v1331, 1.0
    %v1333 = vmul.f32 %v1332, %v1317
    %vm1334 = vweird.f32 %v1025
    %v1335 = vand.u32 %v1318, 3
    %vm1336 = vcmp.lt.s32.totalorder %v1335, 2
    %vm1337 = vcmp.eq.s32.totalorder %v1335, 0
    %v1338 = vxor.u32 %v1333, 2147483648
    %v1339 = vsel %vm1337, %v1325, %v1338
    %vm1340 = vcmp.eq.s32.totalorder %v1335, 2
    %v1341 = vxor.u32 %v1325, 2147483648
    %v1342 = vsel %vm1340, %v1341, %v1333
    %v1343 = vsel %vm1336, %v1339, %v1342
    %v1344 = vsel %vm1334, nan, %v1343
    %1346 = vst [vmem:[#allocation1] ss:$2 sm:$0xff] %v1344
    %v1347 = vld.sshfl [vmem:[#allocation1] sm:$0xff pattern:$0x75316420]
    %v1348 = vld.sshfl [vmem:[#allocation1 + $0x8] sm:$0xff pattern:$0x75316420]
    %1351 = vst [vmem:[#allocation2 + $0x30] sm:$0x7] %v1347
    %1352 = vst [vmem:[#allocation2 + $0x38] sm:$0x7] %v1348
    %v1353 = vld [vmem:[#allocation2] sm:$0xff]
    %v1354 = vld [vmem:[#allocation2 + $0x10] sm:$0xff]
    %v1355 = vld [vmem:[#allocation2 + $0x20] sm:$0xff]
    %v1356 = vld [vmem:[#allocation2 + $0x30] sm:$0xff]
    %1357 = vxpose.xlu0.b32.start [1/16] %v1353, 128
    %1358 = vxpose.xlu0.b32.cont [2/16] %v1354, 128
    %1359 = vxpose.xlu0.b32.cont [3/16] %v1355, 128
    %1360 = vxpose.xlu0.b32.cont [4/16] %v1356, 128
    %1361 = vxpose.xlu0.b32.cont [5/16] 0.0, 128
    %1362 = vxpose.xlu0.b32.cont [6/16] 0.0, 128
    %1363 = vxpose.xlu0.b32.cont [7/16] 0.0, 128
    %1364 = vxpose.xlu0.b32.cont [8/16] 0.0, 128
    %1365 = vxpose.xlu0.b32.cont [9/16] 0.0, 128
    %1366 = vxpose.xlu0.b32.cont [10/16] 0.0, 128
    %1367 = vxpose.xlu0.b32.cont [11/16] 0.0, 128
    %1368 = vxpose.xlu0.b32.cont [12/16] 0.0, 128
    %1369 = vxpose.xlu0.b32.cont [13/16] 0.0, 128
    %1370 = vxpose.xlu0.b32.cont [14/16] 0.0, 128
    %1371 = vxpose.xlu0.b32.cont [15/16] 0.0, 128
    %1372 = vxpose.xlu0.b32.end [16/16] 0.0, 128
    %v1373 = vpop.trf.xlu0
    %v1374 = vpop.trf.xlu0
    %v1375 = vpop.trf.xlu0
    %v1376 = vpop.trf.xlu0
    %v1377 = vpop.trf.xlu0
    %v1378 = vpop.trf.xlu0
    %v1379 = vpop.trf.xlu0
    %v1380 = vpop.trf.xlu0
    %v1381 = vpop.trf.xlu0
    %v1382 = vpop.trf.xlu0
    %v1383 = vpop.trf.xlu0
    %v1384 = vpop.trf.xlu0
    %v1385 = vpop.trf.xlu0
    %v1386 = vpop.trf.xlu0
    %v1387 = vpop.trf.xlu0
    %v1388 = vpop.trf.xlu0
    %vm1389 = vcmask 220160
    %1390 = vst.msk [vmem:[%s1] sm:$0xff] %vm1389, %v1373
    %1391 = vst.msk [vmem:[%s1 + $0x8] sm:$0xff] %vm1389, %v1374
    %1392 = vst.msk [vmem:[%s1 + $0x10] sm:$0xff] %vm1389, %v1375
    %1393 = vst.msk [vmem:[%s1 + $0x18] sm:$0xff] %vm1389, %v1376
    %1394 = vst.msk [vmem:[%s1 + $0x20] sm:$0xff] %vm1389, %v1377
    %1395 = vst.msk [vmem:[%s1 + $0x28] sm:$0xff] %vm1389, %v1378
    %1396 = vst.msk [vmem:[%s1 + $0x30] sm:$0xff] %vm1389, %v1379
    %1397 = vst.msk [vmem:[%s1 + $0x38] sm:$0xff] %vm1389, %v1380
    %1398 = vst.msk [vmem:[%s1 + $0x40] sm:$0xff] %vm1389, %v1381
    %1399 = vst.msk [vmem:[%s1 + $0x48] sm:$0xff] %vm1389, %v1382
    %1400 = vst.msk [vmem:[%s1 + $0x50] sm:$0xff] %vm1389, %v1383
    %1401 = vst.msk [vmem:[%s1 + $0x58] sm:$0xff] %vm1389, %v1384
    %1402 = vst.msk [vmem:[%s1 + $0x60] sm:$0xff] %vm1389, %v1385
    %1403 = vst.msk [vmem:[%s1 + $0x68] sm:$0xff] %vm1389, %v1386
    %1404 = vst.msk [vmem:[%s1 + $0x70] sm:$0xff] %vm1389, %v1387
    %1405 = vst.msk [vmem:[%s1 + $0x78] sm:$0xff] %vm1389, %v1388
    %v1406 = vld [vmem:[#allocation2 + $0x8] sm:$0xff]
    %v1407 = vld [vmem:[#allocation2 + $0x18] sm:$0xff]
    %v1408 = vld [vmem:[#allocation2 + $0x28] sm:$0xff]
    %v1409 = vld [vmem:[#allocation2 + $0x38] sm:$0xff]
    %1410 = vxpose.xlu0.b32.start [1/16] %v1406, 128
    %1411 = vxpose.xlu0.b32.cont [2/16] %v1407, 128
    %1412 = vxpose.xlu0.b32.cont [3/16] %v1408, 128
    %1413 = vxpose.xlu0.b32.cont [4/16] %v1409, 128
    %1414 = vxpose.xlu0.b32.cont [5/16] 0.0, 128
    %1415 = vxpose.xlu0.b32.cont [6/16] 0.0, 128
    %1416 = vxpose.xlu0.b32.cont [7/16] 0.0, 128
    %1417 = vxpose.xlu0.b32.cont [8/16] 0.0, 128
    %1418 = vxpose.xlu0.b32.cont [9/16] 0.0, 128
    %1419 = vxpose.xlu0.b32.cont [10/16] 0.0, 128
    %1420 = vxpose.xlu0.b32.cont [11/16] 0.0, 128
    %1421 = vxpose.xlu0.b32.cont [12/16] 0.0, 128
    %1422 = vxpose.xlu0.b32.cont [13/16] 0.0, 128
    %1423 = vxpose.xlu0.b32.cont [14/16] 0.0, 128
    %1424 = vxpose.xlu0.b32.cont [15/16] 0.0, 128
    %1425 = vxpose.xlu0.b32.end [16/16] 0.0, 128
    %v1426 = vpop.trf.xlu0
    %v1427 = vpop.trf.xlu0
    %v1428 = vpop.trf.xlu0
    %v1429 = vpop.trf.xlu0
    %v1430 = vpop.trf.xlu0
    %v1431 = vpop.trf.xlu0
    %v1432 = vpop.trf.xlu0
    %v1433 = vpop.trf.xlu0
    %v1434 = vpop.trf.xlu0
    %v1435 = vpop.trf.xlu0
    %v1436 = vpop.trf.xlu0
    %v1437 = vpop.trf.xlu0
    %v1438 = vpop.trf.xlu0
    %v1439 = vpop.trf.xlu0
    %v1440 = vpop.trf.xlu0
    %v1441 = vpop.trf.xlu0
    %1442 = vst.msk [vmem:[%s1 + $0x80] sm:$0xff] %vm1389, %v1426
    %1443 = vst.msk [vmem:[%s1 + $0x88] sm:$0xff] %vm1389, %v1427
    %1444 = vst.msk [vmem:[%s1 + $0x90] sm:$0xff] %vm1389, %v1428
    %1445 = vst.msk [vmem:[%s1 + $0x98] sm:$0xff] %vm1389, %v1429
    %1446 = vst.msk [vmem:[%s1 + $0xa0] sm:$0xff] %vm1389, %v1430
    %1447 = vst.msk [vmem:[%s1 + $0xa8] sm:$0xff] %vm1389, %v1431
    %1448 = vst.msk [vmem:[%s1 + $0xb0] sm:$0xff] %vm1389, %v1432
    %1449 = vst.msk [vmem:[%s1 + $0xb8] sm:$0xff] %vm1389, %v1433
    %1450 = vst.msk [vmem:[%s1 + $0xc0] sm:$0xff] %vm1389, %v1434
    %1451 = vst.msk [vmem:[%s1 + $0xc8] sm:$0xff] %vm1389, %v1435
    %1452 = vst.msk [vmem:[%s1 + $0xd0] sm:$0xff] %vm1389, %v1436
    %1453 = vst.msk [vmem:[%s1 + $0xd8] sm:$0xff] %vm1389, %v1437
    %1454 = vst.msk [vmem:[%s1 + $0xe0] sm:$0xff] %vm1389, %v1438
    %1455 = vst.msk [vmem:[%s1 + $0xe8] sm:$0xff] %vm1389, %v1439
    %1456 = vst.msk [vmem:[%s1 + $0xf0] sm:$0xff] %vm1389, %v1440
    %1457 = vst.msk [vmem:[%s1 + $0xf8] sm:$0xff] %vm1389, %v1441
    // Predicated region
    $region10: #{tpu_custom_call.1} parent=1 // pred_check
      _
    $region11: #{tpu_custom_call.1} parent=1 // pred_check_branch
      %1459 = sbr.rel (0) target = $region13
    $region12: #{tpu_custom_call.1} parent=1 // pred_region
      _
    $region13: #{tpu_custom_call.1} parent=1 // pred_fallthru
      _
    // Predicated region
    $region14: #{tpu_custom_call.1} parent=1 // pred_check
      _
    $region15: #{tpu_custom_call.1} parent=1 // pred_check_branch
      %1461 = sbr.rel (0) target = $region17
    $region16: #{tpu_custom_call.1} parent=1 // pred_region
      _
    $region17: #{tpu_custom_call.1} parent=1 // pred_fallthru
      _
    %1462 = vsyncpa [#allocation4], 1

</llo_original>
